<compile_context>
chip_gen: v6e
topology: v6e:2x2x1
jax: 0.10.0
libtpu: 0.0.40
codegen_flags: <defaults>
</compile_context>

<pallas_src>
import functools

import jax
import jax.numpy as jnp
from jax import lax
from jax.experimental import pallas as pl
from jax.experimental.pallas import tpu as pltpu

EPS = 1e-10


# ----------------------------------------------------------------------------
# Fused forward + backward kernel (one pass over x, y; out written once)
# ----------------------------------------------------------------------------
def _tent_fused_kernel(x_ref, w_ref, b_ref, y_ref, out_ref, dw_ref, db_ref):
    # x_ref:  (C_in,  TN)   input tile, pixel axis on lanes
    # w_ref:  (C_out, C_in) conv weight
    # b_ref:  (C_out, 1)    conv bias
    # y_ref:  (C_out, TN)   target mask tile
    # out_ref:(C_out, TN)   conv output tile
    # dw_ref: (C_out, C_in) per-tile partial dW (unscaled)
    # db_ref: (C_out, 1)    per-tile partial db (unscaled)
    x = x_ref[...]
    out = jnp.dot(w_ref[...], x, preferred_element_type=jnp.float32) + b_ref[...]
    out_ref[...] = out

    # dL/dout scaled by (sum(y)+eps); the 1/(sum(y)+eps) factor is applied in
    # the wrapper after the cross-tile reduction.
    g = -y_ref[...] / (out + EPS)

    # partial dW = g @ x^T : contract the lane (pixel) dim of both operands,
    # no explicit .T materialized.
    dw_ref[...] = lax.dot_general(
        g, x, dimension_numbers=(((1,), (1,)), ((), ())),
        preferred_element_type=jnp.float32)
    db_ref[...] = jnp.sum(g, axis=1, keepdims=True)


# ----------------------------------------------------------------------------
# Wrappers
# ----------------------------------------------------------------------------
def _tent_step(x_t, w, b_col, y_t, *, tile_n):
    cin, n = x_t.shape
    cout = w.shape[0]
    grid_n = n // tile_n  # n is pre-padded to a multiple of tile_n

    return pl.pallas_call(
        _tent_fused_kernel,
        out_shape=(
            jax.ShapeDtypeStruct((cout, n), jnp.float32),            # outputs
            jax.ShapeDtypeStruct((grid_n, cout, cin), jnp.float32),  # dW partials
            jax.ShapeDtypeStruct((grid_n, cout, 1), jnp.float32),    # db partials
        ),
        grid_spec=pltpu.PrefetchScalarGridSpec(
            num_scalar_prefetch=0,
            grid=(grid_n,),
            in_specs=[
                pl.BlockSpec((cin, tile_n), lambda i: (0, i)),
                pl.BlockSpec((cout, cin), lambda i: (0, 0)),
                pl.BlockSpec((cout, 1), lambda i: (0, 0)),
                pl.BlockSpec((cout, tile_n), lambda i: (0, i)),
            ],
            out_specs=[
                pl.BlockSpec((cout, tile_n), lambda i: (0, i)),
                pl.BlockSpec((None, cout, cin), lambda i: (i, 0, 0)),
                pl.BlockSpec((None, cout, 1), lambda i: (i, 0, 0)),
            ],
        ),
        compiler_params=pltpu.CompilerParams(
            dimension_semantics=("parallel",),     # per-tile partials -> safe
            vmem_limit_bytes=32 * 1024 * 1024,     # fits v7x's 64 MiB physical
        ),
    )(x_t, w, b_col, y_t)


@functools.partial(jax.jit, static_argnames=("steps", "tile_n"))
def tent_forward(x_nchw, y_nchw, w, b, lr, *, steps=1, tile_n=512):
    """One (or more) Tent forward-and-adapt steps.

    Args:
      x_nchw: (B, C_in, H, W) input.
      y_nchw: (B, C_out, H, W) target mask (float / one-hot).
      w:      (C_out, C_in) 1x1 conv weight (i.e. torch weight squeezed).
      b:      (C_out,) conv bias.
      tile_n: pixel-axis tile (multiple of 128). 512-2048 is the sweet spot;
              cap lower for very large C_in to stay within v7x VMEM.
    Returns: (outputs NCHW from the last step's pre-update params, new w, new b)
    """
    assert steps > 0
    B, cin, H, W = x_nchw.shape
    cout = y_nchw.shape[1]
    n = B * H * W

    # NCHW -> channels-first flat (C, B*H*W): pixel axis is the lane dim.
    x_t = jnp.transpose(x_nchw, (1, 0, 2, 3)).reshape(cin, n).astype(jnp.float32)
    y_t = jnp.transpose(y_nchw, (1, 0, 2, 3)).reshape(cout, n).astype(jnp.float32)

    # sum(y) only depends on the data -> compute once outside the kernel.
    inv_den = 1.0 / (jnp.sum(y_t) + EPS)

    # Pad pixel axis to a multiple of tile_n (zero pads contribute nothing to
    # the gradients; padded output columns are sliced away below).
    n_pad = -(-n // tile_n) * tile_n
    if n_pad != n:
        x_t = jnp.pad(x_t, ((0, 0), (0, n_pad - n)))
        y_t = jnp.pad(y_t, ((0, 0), (0, n_pad - n)))

    w = w.astype(jnp.float32)
    b_col = b.reshape(cout, 1).astype(jnp.float32)

    out_t = None
    for _ in range(steps):
        out_t, dw_parts, db_parts = _tent_step(x_t, w, b_col, y_t, tile_n=tile_n)
        dw = inv_den * jnp.sum(dw_parts, axis=0)   # (C_out, C_in)
        db = inv_den * jnp.sum(db_parts, axis=0)   # (C_out, 1)
        # SGD step (optimizer.step(); optimizer.zero_grad())
        w = w - lr * dw
        b_col = b_col - lr * db

    outputs_nchw = jnp.transpose(
        out_t[:, :n].reshape(cout, B, H, W), (1, 0, 2, 3))
    return outputs_nchw, w, b_col[:, 0]


# TODO(synk): episodic reset / state-dict deepcopy is host-side parameter
# bookkeeping and stays in plain Python, not Pallas.


# ----------------------------------------------------------------------------
# Pure-JAX reference (VPU-only math, no matmul precision ambiguity)
# ----------------------------------------------------------------------------
def _tent_reference(x_nchw, y_nchw, w, b, lr, steps=1):
    y = y_nchw.astype(jnp.float32)
    den = jnp.sum(y) + EPS
    out = None
    for _ in range(steps):
        out = (w[None, :, :, None, None] * x_nchw[:, None, :, :, :]).sum(axis=2)
        out = out + b[None, :, None, None]
        g = -y / (out + EPS) / den
        dw = (g[:, :, None, :, :] * x_nchw[:, None, :, :, :]).sum(axis=(0, 3, 4))
        db = jnp.sum(g, axis=(0, 2, 3))
        w = w - lr * dw
        b = b - lr * db
    return out, w, b


if __name__ == "__main__":
    B, CIN, COUT, H, W = 2, 4, 4, 16, 16
    key = jax.random.PRNGKey(0)
    kx, ky = jax.random.split(key)

    # Positive inputs/weights so the -y/(out+eps) gradient is well behaved
    # (as required for the PyTorch reference to be well-defined).
    x = jax.random.uniform(kx, (B, CIN, H, W), dtype=jnp.float32,
                           minval=0.1, maxval=1.0)
    labels = jax.random.randint(ky, (B, H, W), 0, COUT)
    y = jnp.transpose(jax.nn.one_hot(labels, COUT, dtype=jnp.float32),
                      (0, 3, 1, 2))                       # NCHW mask

    # Deterministic 1x1 conv params: weight (C_out, C_in), bias (C_out,).
    w0 = (jnp.arange(COUT * CIN, dtype=jnp.float32).reshape(COUT, CIN)
          * 0.01 + 0.05)
    b0 = jnp.full((COUT,), 0.1, dtype=jnp.float32)
    lr = 0.01

    outputs, w_new, b_new = tent_forward(x, y, w0, b0, lr, steps=1, tile_n=512)
    jax.block_until_ready((outputs, w_new, b_new))

    out_exp, w_exp, b_exp = _tent_reference(x, y, w0, b0, lr, steps=1)

    assert outputs.shape == (B, COUT, H, W)
    assert bool(jnp.all(jnp.isfinite(outputs)))
    assert bool(jnp.all(jnp.isfinite(w_new))) and bool(jnp.all(jnp.isfinite(b_new)))
    assert bool(jnp.allclose(outputs, out_exp, rtol=1e-3, atol=1e-5)), \
        float(jnp.max(jnp.abs(outputs - out_exp)))
    assert bool(jnp.allclose(w_new, w_exp, rtol=1e-3, atol=1e-5)), \
        float(jnp.max(jnp.abs(w_new - w_exp)))
    assert bool(jnp.allclose(b_new, b_exp, rtol=1e-3, atol=1e-5)), \
        float(jnp.max(jnp.abs(b_new - b_exp)))
    print("KERNEL_OK")
</pallas_src>

<mosaic_0001>
module attributes {stable_mosaic.version = 11 : i64} {
  func.func @_tent_fused_kernel(%arg0: i32, %arg1: memref<4x512xf32, #tpu.memory_space<vmem>>, %arg2: memref<4x4xf32, #tpu.memory_space<vmem>>, %arg3: memref<4x1xf32, #tpu.memory_space<vmem>>, %arg4: memref<4x512xf32, #tpu.memory_space<vmem>>, %arg5: memref<4x512xf32, #tpu.memory_space<vmem>>, %arg6: memref<1x4x4xf32, #tpu.memory_space<vmem>>, %arg7: memref<1x4x1xf32, #tpu.memory_space<vmem>>) attributes {dimension_semantics = [#tpu.dimension_semantics<parallel>], iteration_bounds = array<i64: 1>, scalar_prefetch = 0 : i64, scratch_operands = 0 : i64, tpu.core_type = #tpu.core_type<tc>, window_params = [{transform_indices = @transform_0, window_bounds = array<i64: 4, 512>}, {pipeline_mode = #tpu.pipeline_mode<synchronous>, transform_indices = @transform_1, window_bounds = array<i64: 4, 4>}, {pipeline_mode = #tpu.pipeline_mode<synchronous>, transform_indices = @transform_2, window_bounds = array<i64: 4, 1>}, {transform_indices = @transform_3, window_bounds = array<i64: 4, 512>}, {transform_indices = @transform_4, window_bounds = array<i64: 4, 512>}, {transform_indices = @transform_5, window_bounds = array<i64: 1, 4, 4>}, {transform_indices = @transform_6, window_bounds = array<i64: 1, 4, 1>}]} {
    %c0 = arith.constant 0 : index
    %c0_0 = arith.constant 0 : index
    %0 = vector.load %arg1[%c0, %c0_0] : memref<4x512xf32, #tpu.memory_space<vmem>>, vector<4x512xf32>
    %c0_1 = arith.constant 0 : index
    %c0_2 = arith.constant 0 : index
    %1 = vector.load %arg2[%c0_1, %c0_2] : memref<4x4xf32, #tpu.memory_space<vmem>>, vector<4x4xf32>
    %cst = arith.constant dense<0.000000e+00> : vector<4x512xf32>
    %2 = tpu.matmul %1, %0, %cst {dimension_numbers = #tpu.dot_dimension_numbers<[1], [0], [0], [1], [0, 0, 1, 1], [], []>} : vector<4x4xf32>, vector<4x512xf32>, vector<4x512xf32> -> vector<4x512xf32>
    %c0_3 = arith.constant 0 : index
    %c0_4 = arith.constant 0 : index
    %3 = vector.load %arg3[%c0_3, %c0_4] : memref<4x1xf32, #tpu.memory_space<vmem>>, vector<4x1xf32>
    %4 = vector.broadcast %3 : vector<4x1xf32> to vector<4x512xf32>
    %5 = arith.addf %2, %4 : vector<4x512xf32>
    %c0_5 = arith.constant 0 : index
    %c0_6 = arith.constant 0 : index
    %6 = vector.load %arg5[%c0_5, %c0_6] : memref<4x512xf32, #tpu.memory_space<vmem>>, vector<4x512xf32>
    tpu.vector_store %arg5[%c0_5, %c0_6], %5 {strides = array<i32>} : memref<4x512xf32, #tpu.memory_space<vmem>>, vector<4x512xf32>,
    %c0_7 = arith.constant 0 : index
    %c0_8 = arith.constant 0 : index
    %7 = vector.load %arg4[%c0_7, %c0_8] : memref<4x512xf32, #tpu.memory_space<vmem>>, vector<4x512xf32>
    %cst_9 = arith.constant 0.000000e+00 : f32
    %8 = vector.broadcast %cst_9 : f32 to vector<4x512xf32>
    %9 = arith.subf %8, %7 : vector<4x512xf32>
    %cst_10 = arith.constant 1.000000e-10 : f32
    %10 = vector.broadcast %cst_10 : f32 to vector<4x512xf32>
    %11 = arith.addf %5, %10 : vector<4x512xf32>
    %12 = arith.divf %9, %11 : vector<4x512xf32>
    %cst_11 = arith.constant dense<0.000000e+00> : vector<4x4xf32>
    %13 = tpu.matmul %12, %0, %cst_11 {dimension_numbers = #tpu.dot_dimension_numbers<[1], [1], [0], [0], [0, 0, 1, 0], [], []>} : vector<4x512xf32>, vector<4x512xf32>, vector<4x4xf32> -> vector<4x4xf32>
    %c0_12 = arith.constant 0 : index
    %c0_13 = arith.constant 0 : index
    %c0_14 = arith.constant 0 : index
    %14 = vector.load %arg6[%c0_12, %c0_13, %c0_14] : memref<1x4x4xf32, #tpu.memory_space<vmem>>, vector<1x4x4xf32>
    %15 = vector.shape_cast %14 : vector<1x4x4xf32> to vector<4x4xf32>
    %16 = vector.shape_cast %13 : vector<4x4xf32> to vector<1x4x4xf32>
    tpu.vector_store %arg6[%c0_12, %c0_13, %c0_14], %16 {strides = array<i32>} : memref<1x4x4xf32, #tpu.memory_space<vmem>>, vector<1x4x4xf32>,
    %cst_15 = arith.constant dense<0.000000e+00> : vector<4xf32>
    %17 = vector.multi_reduction <add>, %12, %cst_15 [1] : vector<4x512xf32> to vector<4xf32>
    %18 = vector.shape_cast %17 : vector<4xf32> to vector<4x1xf32>
    %c0_16 = arith.constant 0 : index
    %c0_17 = arith.constant 0 : index
    %c0_18 = arith.constant 0 : index
    %19 = vector.load %arg7[%c0_16, %c0_17, %c0_18] : memref<1x4x1xf32, #tpu.memory_space<vmem>>, vector<1x4x1xf32>
    %20 = vector.shape_cast %19 : vector<1x4x1xf32> to vector<4x1xf32>
    %21 = vector.shape_cast %18 : vector<4x1xf32> to vector<1x4x1xf32>
    tpu.vector_store %arg7[%c0_16, %c0_17, %c0_18], %21 {strides = array<i32>} : memref<1x4x1xf32, #tpu.memory_space<vmem>>, vector<1x4x1xf32>,
    return
  }
  func.func @transform_0(%arg0: i32) -> (i32, i32) {
    %c0_i32 = arith.constant 0 : i32
    %c0_i32_0 = arith.constant 0 : i32
    return %c0_i32, %arg0 : i32, i32
  }
  func.func @transform_1(%arg0: i32) -> (i32, i32) {
    %c0_i32 = arith.constant 0 : i32
    %c0_i32_0 = arith.constant 0 : i32
    %c0_i32_1 = arith.constant 0 : i32
    return %c0_i32, %c0_i32_0 : i32, i32
  }
  func.func @transform_2(%arg0: i32) -> (i32, i32) {
    %c0_i32 = arith.constant 0 : i32
    %c0_i32_0 = arith.constant 0 : i32
    %c0_i32_1 = arith.constant 0 : i32
    return %c0_i32, %c0_i32_0 : i32, i32
  }
  func.func @transform_3(%arg0: i32) -> (i32, i32) {
    %c0_i32 = arith.constant 0 : i32
    %c0_i32_0 = arith.constant 0 : i32
    return %c0_i32, %arg0 : i32, i32
  }
  func.func @transform_4(%arg0: i32) -> (i32, i32) {
    %c0_i32 = arith.constant 0 : i32
    %c0_i32_0 = arith.constant 0 : i32
    return %c0_i32, %arg0 : i32, i32
  }
  func.func @transform_5(%arg0: i32) -> (i32, i32, i32) {
    %c0_i32 = arith.constant 0 : i32
    %c0_i32_0 = arith.constant 0 : i32
    %c0_i32_1 = arith.constant 0 : i32
    return %arg0, %c0_i32, %c0_i32_0 : i32, i32, i32
  }
  func.func @transform_6(%arg0: i32) -> (i32, i32, i32) {
    %c0_i32 = arith.constant 0 : i32
    %c0_i32_0 = arith.constant 0 : i32
    %c0_i32_1 = arith.constant 0 : i32
    return %arg0, %c0_i32, %c0_i32_0 : i32, i32, i32
  }
}

</mosaic_0001>

<llo_original>
// kernel: sub.0
$region0: #{sub.0}
  #allocation2 [shape = 's32[1]{0}', space=sflag, size = 0x4, scoped, tag = 'scoped memory for sub.0']
  %s0 = inlined_call_operand.vmem [shape: f32[4], index: 0, kind: input, shape index: {}]
  %s1 = inlined_call_operand.vmem [shape: f32[4], index: 1, kind: input, shape index: {}]
  %s2 = inlined_call_operand.hbm [shape: f32[4], index: 2, kind: output, shape index: {}]
  $region1: #{sub.0} parent=0
    #allocation0 [shape = 'u8[512]{0}', space=vmem, size = 0x400, scoped, tag = 'operand span for operand 2']
    #allocation1 [shape = 's32[1]{0}', space=sflag, size = 0x4, scoped, tag = 'scoped memory for sub.0']
    %3 = vsyncpa [#allocation1], 0
    %v4 = vld [vmem:[%s0] sm:$0x1]
    %v5 = vld [vmem:[%s1] sm:$0x1]
    %6 = xla_tuple %v4, %v5
    %7 = xla_tuple %6
    %v8 = vsub.f32 %v4, %v5
    %9 = xla_tuple %v8
    %10 = vst [vmem:[#allocation0] sm:$0x1] %v8
    %s12 = ssub.s32 16, 16
    %13 = vsyncadd [#allocation1], %s12
    %s15 = sshll.u32 [#allocation0], 4
    %s16 = int_to_ptr.vmem [resolvable:$true] %s15
    %18 = dma.vmem_to_hbm [thread:$0]  %s16, 16, %s2, [#allocation1]
    %19 = dma.done [#allocation1], 16
    %20 = vsyncpa [#allocation1], 1

// kernel: tent_forward.1
$region0: #{tent_forward.1}
  #allocation0 [shape = 'u32[]', space=smem, size = 0x4, offset = 0x4, fixed_abs, tag = 'smem constant byte address 0x4 - core index']
  #allocation1 [shape = 'u32[144,128]{1,0:T(1,128)}', space=vmem, size = 0x12000, scoped, tag = 'internal scratch']
  %s0 = inlined_call_operand.vmem [shape: f32[4,512], index: 0, kind: input, shape index: {}]
  %s1 = inlined_call_operand.vmem [shape: f32[4,4], index: 1, kind: input, shape index: {}]
  %s2 = inlined_call_operand.vmem [shape: f32[4,1], index: 2, kind: input, shape index: {}]
  %s3 = inlined_call_operand.vmem [shape: f32[4,512], index: 3, kind: input, shape index: {}]
  %s4 = inlined_call_operand.vmem [shape: f32[4,512], index: 4, kind: output, shape index: {0}]
  %s5 = inlined_call_operand.vmem [shape: f32[1,4,4], index: 5, kind: output, shape index: {1}]
  %s6 = inlined_call_operand.vmem [shape: f32[1,4,1], index: 6, kind: output, shape index: {2}]
  %7 = xla_tuple %s4, %s5, %s6
  %s8 = sld [smem:[#allocation0]]
  $region42: #{tent_forward.1} parent=0
    _
  %s10 = ssub.s32 1, %s8
  %s11 = scalar_select 0, %s10, %s8
  // Predicated region
  $region2: #{tent_forward.1} parent=0 // pred_check
    _
  $region3: #{tent_forward.1} parent=0 // pred_check_branch
    %13 = sbr.rel (0) target = $region5
  $region4: #{tent_forward.1} parent=0 // pred_region
    _
  $region5: #{tent_forward.1} parent=0 // pred_fallthru
    _
  // Predicated region
  $region6: #{tent_forward.1} parent=0 // pred_check
    _
  $region7: #{tent_forward.1} parent=0 // pred_check_branch
    %15 = sbr.rel (0) target = $region9
  $region8: #{tent_forward.1} parent=0 // pred_region
    _
  $region9: #{tent_forward.1} parent=0 // pred_fallthru
    _
  // Predicated region
  $region10: #{tent_forward.1} parent=0 // pred_check
    _
  $region11: #{tent_forward.1} parent=0 // pred_check_branch
    %17 = sbr.rel (0) target = $region13
  $region12: #{tent_forward.1} parent=0 // pred_region
    _
  $region13: #{tent_forward.1} parent=0 // pred_fallthru
    _
  // Predicated region
  $region14: #{tent_forward.1} parent=0 // pred_check
    _
  $region15: #{tent_forward.1} parent=0 // pred_check_branch
    %19 = sbr.rel (0) target = $region17
  $region16: #{tent_forward.1} parent=0 // pred_region
    _
  $region17: #{tent_forward.1} parent=0 // pred_fallthru
    _
  %v20 = vld [vmem:[%s0] sm:$0xff]
  %v21 = vld [vmem:[%s0 + $0x8] sm:$0xff]
  %v22 = vld [vmem:[%s1] sm:$0xf]
  %v23 = vld [vmem:[%s2] sm:$0xf]
  %25 = vset.pattern.permute.xlu0 0
  %26 = vperm.xlu0 %25, %v23
  %v27 = vpop.permute.xlu0 %26
  %v31 = vcombine.high %v20, %v20
  %v32 = vcombine.high %v21, %v21
  %vm33 = vcmask 31744
  %v35 = vsel %vm33, %v22, 0
  %vm37 = vcmask 1043456
  %v38 = vsel %vm37, %v20, 0
  %v40 = vsel %vm37, %v31, 0
  %v42 = vsel %vm37, %v21, 0
  %v44 = vsel %vm37, %v32, 0
  %46 = vmatprep.subr.mxu0 0.0
  %47 = vmatpush1.msra.mxu0 0.0
  %48 = vmatprep.subr.mxu0 0.0
  %49 = vmatpush1.msra.mxu0 0.0
  %50 = vmatprep.subr.mxu0 0.0
  %51 = vmatpush1.msra.mxu0 0.0
  %52 = vmatprep.subr.mxu0 0.0
  %53 = vmatpush1.msra.mxu0 0.0
  %54 = vmatprep.subr.mxu0 0.0
  %55 = vmatpush1.msra.mxu0 0.0
  %56 = vmatprep.subr.mxu0 0.0
  %57 = vmatpush1.msra.mxu0 0.0
  %58 = vmatprep.subr.mxu0 0.0
  %59 = vmatpush1.msra.mxu0 0.0
  %60 = vmatprep.subr.mxu0 0.0
  %61 = vmatpush1.msra.mxu0 0.0
  %62 = vmatprep.subr.mxu0 0.0
  %63 = vmatpush1.msra.mxu0 0.0
  %64 = vmatprep.subr.mxu0 0.0
  %65 = vmatpush1.msra.mxu0 0.0
  %66 = vmatprep.subr.mxu0 0.0
  %67 = vmatpush1.msra.mxu0 0.0
  %68 = vmatprep.subr.mxu0 0.0
  %69 = vmatpush1.msra.mxu0 0.0
  %70 = vmatprep.subr.mxu0 0.0
  %71 = vmatpush1.msra.mxu0 0.0
  %72 = vmatprep.subr.mxu0 0.0
  %73 = vmatpush1.msra.mxu0 0.0
  %74 = vmatprep.subr.mxu0 0.0
  %75 = vmatpush1.msra.mxu0 0.0
  %76 = vmatprep.subr.mxu0 %v40
  %77 = vmatpush1.msra.mxu0 %v38
  %78 = vmatprep.subr.mxu0 0.0
  %79 = vmatpush2.msra.mxu0 0.0
  %80 = vmatprep.subr.mxu0 0.0
  %81 = vmatpush2.msra.mxu0 0.0
  %82 = vmatprep.subr.mxu0 0.0
  %83 = vmatpush2.msra.mxu0 0.0
  %84 = vmatprep.subr.mxu0 0.0
  %85 = vmatpush2.msra.mxu0 0.0
  %86 = vmatprep.subr.mxu0 0.0
  %87 = vmatpush2.msra.mxu0 0.0
  %88 = vmatprep.subr.mxu0 0.0
  %89 = vmatpush2.msra.mxu0 0.0
  %90 = vmatprep.subr.mxu0 0.0
  %91 = vmatpush2.msra.mxu0 0.0
  %92 = vmatprep.subr.mxu0 0.0
  %93 = vmatpush2.msra.mxu0 0.0
  %94 = vmatprep.subr.mxu0 0.0
  %95 = vmatpush2.msra.mxu0 0.0
  %96 = vmatprep.subr.mxu0 0.0
  %97 = vmatpush2.msra.mxu0 0.0
  %98 = vmatprep.subr.mxu0 0.0
  %99 = vmatpush2.msra.mxu0 0.0
  %100 = vmatprep.subr.mxu0 0.0
  %101 = vmatpush2.msra.mxu0 0.0
  %102 = vmatprep.subr.mxu0 0.0
  %103 = vmatpush2.msra.mxu0 0.0
  %104 = vmatprep.subr.mxu0 0.0
  %105 = vmatpush2.msra.mxu0 0.0
  %106 = vmatprep.subr.mxu0 0.0
  %107 = vmatpush2.msra.mxu0 0.0
  %108 = vmatprep.subr.mxu0 0.0
  %109 = vmatpush2.msra.mxu0 0.0
  %110 = vmatprep.mubr.f32.mxu0 0.0
  %111 = vmatmul.mubr.f32.gmra.mxu0 %v35
  %v112 = vpop.f32.mrf.mxu0
  %v113 = vadd.f32 %v27, %v112
  %v114 = vpop.f32.mrf.mxu0
  %v115 = vadd.f32 %v27, %v114
  %116 = vdwg.mxu0
  %117 = vmatprep.subr.mxu0 0.0
  %118 = vmatpush1.msra.mxu0 0.0
  %119 = vmatprep.subr.mxu0 0.0
  %120 = vmatpush1.msra.mxu0 0.0
  %121 = vmatprep.subr.mxu0 0.0
  %122 = vmatpush1.msra.mxu0 0.0
  %123 = vmatprep.subr.mxu0 0.0
  %124 = vmatpush1.msra.mxu0 0.0
  %125 = vmatprep.subr.mxu0 0.0
  %126 = vmatpush1.msra.mxu0 0.0
  %127 = vmatprep.subr.mxu0 0.0
  %128 = vmatpush1.msra.mxu0 0.0
  %129 = vmatprep.subr.mxu0 0.0
  %130 = vmatpush1.msra.mxu0 0.0
  %131 = vmatprep.subr.mxu0 0.0
  %132 = vmatpush1.msra.mxu0 0.0
  %133 = vmatprep.subr.mxu0 0.0
  %134 = vmatpush1.msra.mxu0 0.0
  %135 = vmatprep.subr.mxu0 0.0
  %136 = vmatpush1.msra.mxu0 0.0
  %137 = vmatprep.subr.mxu0 0.0
  %138 = vmatpush1.msra.mxu0 0.0
  %139 = vmatprep.subr.mxu0 0.0
  %140 = vmatpush1.msra.mxu0 0.0
  %141 = vmatprep.subr.mxu0 0.0
  %142 = vmatpush1.msra.mxu0 0.0
  %143 = vmatprep.subr.mxu0 0.0
  %144 = vmatpush1.msra.mxu0 0.0
  %145 = vmatprep.subr.mxu0 0.0
  %146 = vmatpush1.msra.mxu0 0.0
  %147 = vmatprep.subr.mxu0 %v44
  %148 = vmatpush1.msra.mxu0 %v42
  %149 = vmatprep.subr.mxu0 0.0
  %150 = vmatpush2.msra.mxu0 0.0
  %151 = vmatprep.subr.mxu0 0.0
  %152 = vmatpush2.msra.mxu0 0.0
  %153 = vmatprep.subr.mxu0 0.0
  %154 = vmatpush2.msra.mxu0 0.0
  %155 = vmatprep.subr.mxu0 0.0
  %156 = vmatpush2.msra.mxu0 0.0
  %157 = vmatprep.subr.mxu0 0.0
  %158 = vmatpush2.msra.mxu0 0.0
  %159 = vmatprep.subr.mxu0 0.0
  %160 = vmatpush2.msra.mxu0 0.0
  %161 = vmatprep.subr.mxu0 0.0
  %162 = vmatpush2.msra.mxu0 0.0
  %163 = vmatprep.subr.mxu0 0.0
  %164 = vmatpush2.msra.mxu0 0.0
  %165 = vmatprep.subr.mxu0 0.0
  %166 = vmatpush2.msra.mxu0 0.0
  %167 = vmatprep.subr.mxu0 0.0
  %168 = vmatpush2.msra.mxu0 0.0
  %169 = vmatprep.subr.mxu0 0.0
  %170 = vmatpush2.msra.mxu0 0.0
  %171 = vmatprep.subr.mxu0 0.0
  %172 = vmatpush2.msra.mxu0 0.0
  %173 = vmatprep.subr.mxu0 0.0
  %174 = vmatpush2.msra.mxu0 0.0
  %175 = vmatprep.subr.mxu0 0.0
  %176 = vmatpush2.msra.mxu0 0.0
  %177 = vmatprep.subr.mxu0 0.0
  %178 = vmatpush2.msra.mxu0 0.0
  %179 = vmatprep.subr.mxu0 0.0
  %180 = vmatpush2.msra.mxu0 0.0
  %181 = vmatprep.mubr.f32.mxu0 0.0
  %182 = vmatmul.mubr.f32.gmra.mxu0 %v35
  %v183 = vpop.f32.mrf.mxu0
  %v184 = vadd.f32 %v27, %v183
  %v185 = vpop.f32.mrf.mxu0
  %v186 = vadd.f32 %v27, %v185
  %187 = vdwg.mxu0
  %v192 = vcombine.low %v113, %v115
  %v193 = vcombine.low %v184, %v186
  %196 = vst [vmem:[%s4] sm:$0xff] %v192
  %197 = vst [vmem:[%s4 + $0x8] sm:$0xff] %v193
  %v198 = vld [vmem:[%s3] sm:$0xff]
  %v199 = vld [vmem:[%s3 + $0x8] sm:$0xff]
  %v200 = vsub.f32 0.0, %v198
  %v201 = vsub.f32 0.0, %v199
  %v202 = vadd.f32 %v113, 1e-10
  %v203 = vadd.f32 %v115, 1e-10
  %v204 = vadd.f32 %v184, 1e-10
  %v205 = vadd.f32 %v186, 1e-10
  %v210 = vcombine.low %v202, %v203
  %v211 = vcombine.low %v204, %v205
  %v214 = vrcp.pop %v210
  %v215 = vmul.f32 %v200, %v214
  %v216 = vrcp.pop %v211
  %v217 = vmul.f32 %v201, %v216
  %v220 = vcombine.high %v215, %v215
  %v221 = vcombine.high %v217, %v217
  %226 = vmatprep.subr.mxu0 0.0
  %227 = vmatpush1.xpose.msra.mxu0 0.0
  %228 = vmatprep.subr.mxu0 0.0
  %229 = vmatpush1.xpose.msra.mxu0 0.0
  %230 = vmatprep.subr.mxu0 0.0
  %231 = vmatpush1.xpose.msra.mxu0 0.0
  %232 = vmatprep.subr.mxu0 0.0
  %233 = vmatpush1.xpose.msra.mxu0 0.0
  %234 = vmatprep.subr.mxu0 0.0
  %235 = vmatpush1.xpose.msra.mxu0 0.0
  %236 = vmatprep.subr.mxu0 0.0
  %237 = vmatpush1.xpose.msra.mxu0 0.0
  %238 = vmatprep.subr.mxu0 0.0
  %239 = vmatpush1.xpose.msra.mxu0 0.0
  %240 = vmatprep.subr.mxu0 0.0
  %241 = vmatpush1.xpose.msra.mxu0 0.0
  %242 = vmatprep.subr.mxu0 0.0
  %243 = vmatpush1.xpose.msra.mxu0 0.0
  %244 = vmatprep.subr.mxu0 0.0
  %245 = vmatpush1.xpose.msra.mxu0 0.0
  %246 = vmatprep.subr.mxu0 0.0
  %247 = vmatpush1.xpose.msra.mxu0 0.0
  %248 = vmatprep.subr.mxu0 0.0
  %249 = vmatpush1.xpose.msra.mxu0 0.0
  %250 = vmatprep.subr.mxu0 0.0
  %251 = vmatpush1.xpose.msra.mxu0 0.0
  %252 = vmatprep.subr.mxu0 0.0
  %253 = vmatpush1.xpose.msra.mxu0 0.0
  %254 = vmatprep.subr.mxu0 0.0
  %255 = vmatpush1.xpose.msra.mxu0 0.0
  %256 = vmatprep.subr.mxu0 %v31
  %257 = vmatpush1.xpose.msra.mxu0 %v20
  %258 = vmatprep.subr.mxu0 0.0
  %259 = vmatpush2.xpose.msra.mxu0 0.0
  %260 = vmatprep.subr.mxu0 0.0
  %261 = vmatpush2.xpose.msra.mxu0 0.0
  %262 = vmatprep.subr.mxu0 0.0
  %263 = vmatpush2.xpose.msra.mxu0 0.0
  %264 = vmatprep.subr.mxu0 0.0
  %265 = vmatpush2.xpose.msra.mxu0 0.0
  %266 = vmatprep.subr.mxu0 0.0
  %267 = vmatpush2.xpose.msra.mxu0 0.0
  %268 = vmatprep.subr.mxu0 0.0
  %269 = vmatpush2.xpose.msra.mxu0 0.0
  %270 = vmatprep.subr.mxu0 0.0
  %271 = vmatpush2.xpose.msra.mxu0 0.0
  %272 = vmatprep.subr.mxu0 0.0
  %273 = vmatpush2.xpose.msra.mxu0 0.0
  %274 = vmatprep.subr.mxu0 0.0
  %275 = vmatpush2.xpose.msra.mxu0 0.0
  %276 = vmatprep.subr.mxu0 0.0
  %277 = vmatpush2.xpose.msra.mxu0 0.0
  %278 = vmatprep.subr.mxu0 0.0
  %279 = vmatpush2.xpose.msra.mxu0 0.0
  %280 = vmatprep.subr.mxu0 0.0
  %281 = vmatpush2.xpose.msra.mxu0 0.0
  %282 = vmatprep.subr.mxu0 0.0
  %283 = vmatpush2.xpose.msra.mxu0 0.0
  %284 = vmatprep.subr.mxu0 0.0
  %285 = vmatpush2.xpose.msra.mxu0 0.0
  %286 = vmatprep.subr.mxu0 0.0
  %287 = vmatpush2.xpose.msra.mxu0 0.0
  %288 = vmatprep.subr.mxu0 0.0
  %289 = vmatpush2.xpose.msra.mxu0 0.0
  %290 = vmatprep.mubr.f32.mxu0 %v220
  %291 = vmatmul.mubr.f32.gmra.mxu0 %v215
  %v292 = vpop.f32.mrf.mxu0
  %v293 = vadd.f32 0.0, %v292
  %v294 = vpop.f32.mrf.mxu0
  %295 = vdwg.mxu0
  %296 = vmatprep.subr.mxu0 0.0
  %297 = vmatpush1.xpose.msra.mxu0 0.0
  %298 = vmatprep.subr.mxu0 0.0
  %299 = vmatpush1.xpose.msra.mxu0 0.0
  %300 = vmatprep.subr.mxu0 0.0
  %301 = vmatpush1.xpose.msra.mxu0 0.0
  %302 = vmatprep.subr.mxu0 0.0
  %303 = vmatpush1.xpose.msra.mxu0 0.0
  %304 = vmatprep.subr.mxu0 0.0
  %305 = vmatpush1.xpose.msra.mxu0 0.0
  %306 = vmatprep.subr.mxu0 0.0
  %307 = vmatpush1.xpose.msra.mxu0 0.0
  %308 = vmatprep.subr.mxu0 0.0
  %309 = vmatpush1.xpose.msra.mxu0 0.0
  %310 = vmatprep.subr.mxu0 0.0
  %311 = vmatpush1.xpose.msra.mxu0 0.0
  %312 = vmatprep.subr.mxu0 0.0
  %313 = vmatpush1.xpose.msra.mxu0 0.0
  %314 = vmatprep.subr.mxu0 0.0
  %315 = vmatpush1.xpose.msra.mxu0 0.0
  %316 = vmatprep.subr.mxu0 0.0
  %317 = vmatpush1.xpose.msra.mxu0 0.0
  %318 = vmatprep.subr.mxu0 0.0
  %319 = vmatpush1.xpose.msra.mxu0 0.0
  %320 = vmatprep.subr.mxu0 0.0
  %321 = vmatpush1.xpose.msra.mxu0 0.0
  %322 = vmatprep.subr.mxu0 0.0
  %323 = vmatpush1.xpose.msra.mxu0 0.0
  %324 = vmatprep.subr.mxu0 0.0
  %325 = vmatpush1.xpose.msra.mxu0 0.0
  %326 = vmatprep.subr.mxu0 %v32
  %327 = vmatpush1.xpose.msra.mxu0 %v21
  %328 = vmatprep.subr.mxu0 0.0
  %329 = vmatpush2.xpose.msra.mxu0 0.0
  %330 = vmatprep.subr.mxu0 0.0
  %331 = vmatpush2.xpose.msra.mxu0 0.0
  %332 = vmatprep.subr.mxu0 0.0
  %333 = vmatpush2.xpose.msra.mxu0 0.0
  %334 = vmatprep.subr.mxu0 0.0
  %335 = vmatpush2.xpose.msra.mxu0 0.0
  %336 = vmatprep.subr.mxu0 0.0
  %337 = vmatpush2.xpose.msra.mxu0 0.0
  %338 = vmatprep.subr.mxu0 0.0
  %339 = vmatpush2.xpose.msra.mxu0 0.0
  %340 = vmatprep.subr.mxu0 0.0
  %341 = vmatpush2.xpose.msra.mxu0 0.0
  %342 = vmatprep.subr.mxu0 0.0
  %343 = vmatpush2.xpose.msra.mxu0 0.0
  %344 = vmatprep.subr.mxu0 0.0
  %345 = vmatpush2.xpose.msra.mxu0 0.0
  %346 = vmatprep.subr.mxu0 0.0
  %347 = vmatpush2.xpose.msra.mxu0 0.0
  %348 = vmatprep.subr.mxu0 0.0
  %349 = vmatpush2.xpose.msra.mxu0 0.0
  %350 = vmatprep.subr.mxu0 0.0
  %351 = vmatpush2.xpose.msra.mxu0 0.0
  %352 = vmatprep.subr.mxu0 0.0
  %353 = vmatpush2.xpose.msra.mxu0 0.0
  %354 = vmatprep.subr.mxu0 0.0
  %355 = vmatpush2.xpose.msra.mxu0 0.0
  %356 = vmatprep.subr.mxu0 0.0
  %357 = vmatpush2.xpose.msra.mxu0 0.0
  %358 = vmatprep.subr.mxu0 0.0
  %359 = vmatpush2.xpose.msra.mxu0 0.0
  %360 = vmatprep.mubr.f32.mxu0 %v221
  %361 = vmatmul.mubr.f32.gmra.mxu0 %v217
  %v362 = vpop.f32.mrf.mxu0
  %v363 = vadd.f32 %v293, %v362
  %v364 = vpop.f32.mrf.mxu0
  %365 = vdwg.mxu0
  %vm366 = vcmask 27648
  %367 = vst.msk [vmem:[%s5] sm:$0xf] %vm366, %v363
  %v368 = vsel %vm37, %v215, 0.0
  %v369 = vsel %vm37, %v220, 0.0
  %v370 = vadd.f32 %v368, %v369
  %v371 = vsel %vm37, %v217, 0.0
  %v372 = vadd.f32 %v370, %v371
  %v373 = vsel %vm37, %v221, 0.0
  %v374 = vadd.f32 %v372, %v373
  %375 = vadd.xlane.f32.xlu0 %v374
  %v376 = vpop.xlane.xlu0 %375
  %vm377 = vcmask 3072
  %378 = vst.msk [vmem:[%s6] sm:$0xf] %vm377, %v376
  // Predicated region
  $region18: #{tent_forward.1} parent=0 // pred_check
    _
  $region19: #{tent_forward.1} parent=0 // pred_check_branch
    %380 = sbr.rel (0) target = $region21
  $region20: #{tent_forward.1} parent=0 // pred_region
    _
  $region21: #{tent_forward.1} parent=0 // pred_fallthru
    _
  // Predicated region
  $region22: #{tent_forward.1} parent=0 // pred_check
    _
  $region23: #{tent_forward.1} parent=0 // pred_check_branch
    %382 = sbr.rel (0) target = $region25
  $region24: #{tent_forward.1} parent=0 // pred_region
    _
  $region25: #{tent_forward.1} parent=0 // pred_fallthru
    _
  // Predicated region
  $region26: #{tent_forward.1} parent=0 // pred_check
    _
  $region27: #{tent_forward.1} parent=0 // pred_check_branch
    %384 = sbr.rel (0) target = $region29
  $region28: #{tent_forward.1} parent=0 // pred_region
    _
  $region29: #{tent_forward.1} parent=0 // pred_fallthru
    _
  // Predicated region
  $region30: #{tent_forward.1} parent=0 // pred_check
    _
  $region31: #{tent_forward.1} parent=0 // pred_check_branch
    %386 = sbr.rel (0) target = $region33
  $region32: #{tent_forward.1} parent=0 // pred_region
    _
  $region33: #{tent_forward.1} parent=0 // pred_fallthru
    _
  // Predicated region
  $region34: #{tent_forward.1} parent=0 // pred_check
    _
  $region35: #{tent_forward.1} parent=0 // pred_check_branch
    %388 = sbr.rel (0) target = $region37
  $region36: #{tent_forward.1} parent=0 // pred_region
    _
  $region37: #{tent_forward.1} parent=0 // pred_fallthru
    _
  // Predicated region
  $region38: #{tent_forward.1} parent=0 // pred_check
    _
  $region39: #{tent_forward.1} parent=0 // pred_check_branch
    %390 = sbr.rel (0) target = $region41
  $region40: #{tent_forward.1} parent=0 // pred_region
    _
  $region41: #{tent_forward.1} parent=0 // pred_fallthru
    _

</llo_original>
